<compile_context>
chip_gen: v7x
topology: tpu7x:2x2x1
jax: 0.10.0
libtpu: 0.0.40
codegen_flags: <defaults>
</compile_context>

<pallas_src>
import functools
import math

import jax
import jax.numpy as jnp
from jax.experimental import pallas as pl
from jax.experimental.pallas import tpu as pltpu


def make_sinusoidal_pe(d_model: int, max_len: int = 5000) -> jnp.ndarray:
    """Sinusoidal PE buffer identical to the PyTorch __init__; shape (max_len, d_model), f32."""
    position = jnp.arange(max_len, dtype=jnp.float32)[:, None]                 # (max_len, 1)
    div_term = jnp.exp(
        jnp.arange(0, d_model, 2, dtype=jnp.float32) * (-math.log(10000.0) / d_model))
    pe = jnp.zeros((max_len, d_model), dtype=jnp.float32)
    pe = pe.at[:, 0::2].set(jnp.sin(position * div_term))
    pe = pe.at[:, 1::2].set(jnp.cos(position * div_term))
    return pe


def _round_up(v: int, m: int) -> int:
    return (v + m - 1) // m * m


def _tpu_generation_defaults():
    """(vmem_budget_bytes, num_tensorcores, vmem_limit_bytes or None) per chip generation."""
    kind = ""
    try:
        kind = jax.devices()[0].device_kind.lower()
    except Exception:
        pass
    if "v7" in kind or "7x" in kind:
        return 36 << 20, 2, 48 << 20      # 64 MiB physical per TC, 2 TCs -> raise scoped limit
    if "v6" in kind:
        return 24 << 20, 1, None          # inside the 32 MiB scoped default
    if "v5e" in kind or "v5 lite" in kind or "v5lite" in kind:
        return 10 << 20, 1, None          # inside the 16 MiB scoped default
    return 8 << 20, 1, None               # unknown chip: conservative


def _choose_tile_t(T: int, per_row_bytes: int, budget_bytes: int, num_cores: int,
                   max_tile_t: int = 2048) -> int:
    """Largest time tile fitting the VMEM budget, capped so the grid keeps >=2*cores steps."""
    tile = max(8, budget_bytes // max(per_row_bytes, 1))
    tile = min(tile, max_tile_t, T)
    want_steps = max(2, 2 * num_cores)          # DMA in/out overlap + feed every TensorCore
    if T // want_steps >= 8:
        tile = min(tile, T // want_steps)
    if tile >= 8:
        tile -= tile % 8                        # keep whole sublane groups
    return max(1, min(tile, T))


def _pe_add_flat_kernel(x_ref, pe_ref, o_ref, *, batch, d_model):
    # x_ref/o_ref: (tile_t, batch*d_model) in x dtype; pe_ref: (tile_t, d_model) float32.
    pe = pe_ref[...]
    for b in range(batch):                      # static unroll; only used when batch < 8
        sl = slice(b * d_model, (b + 1) * d_model)
        o_ref[:, sl] = (x_ref[:, sl].astype(jnp.float32) + pe).astype(o_ref.dtype)


def _pe_add_kernel(x_ref, pe_ref, o_ref):
    # x_ref/o_ref: (tile_t, B, D); pe_ref: (tile_t, 1, D) float32, broadcasts over batch sublanes.
    o_ref[...] = (x_ref[...].astype(jnp.float32) + pe_ref[...]).astype(o_ref.dtype)


def positional_encoding_forward(x: jnp.ndarray, pe: jnp.ndarray, *,
                                tile_t: int | None = None,
                                donate_x: bool = False) -> jnp.ndarray:
    """x: (T, B, D); pe: (max_len, D) float32 buffer from make_sinusoidal_pe.

    Returns (x_f32 + pe[:T, None, :]).astype(x.dtype) — the add runs in float32.
    """
    T, B, D = x.shape
    max_len, d_pe = pe.shape
    assert d_pe == D, f"pe d_model {d_pe} != x d_model {D}"
    assert T <= max_len, f"seq_len {T} exceeds max_len {max_len}"
    pe = pe.astype(jnp.float32)                       # no-op when already f32 (buffer is f32)
    itemsize = jnp.dtype(x.dtype).itemsize
    budget, cores, vmem_limit = _tpu_generation_defaults()
    compiler_params = pltpu.CompilerParams(
        dimension_semantics=("parallel",), vmem_limit_bytes=vmem_limit)
    io_alias = {0: 0} if donate_x else {}

    if B < 8:
        # Fold batch into the lane axis: no sublane padding, contiguous DMA, lane-dense stores.
        L = B * D
        Lp, Dp = _round_up(L, 128), _round_up(D, 128)
        per_row = 2 * 2 * Lp * itemsize + 2 * Dp * 4   # x + out double-buffered, pe double-buffered
        if tile_t is None:
            tile_t = _choose_tile_t(T, per_row, budget, cores)
        tile_t = min(tile_t, T)
        # Full pe buffer is fine when tile_t is a sublane multiple; only T < 8 needs the slice.
        pe_arr = pe if tile_t % 8 == 0 else pe[:T]
        x2 = x.reshape(T, L)                           # free bitcast
        out2 = pl.pallas_call(
            functools.partial(_pe_add_flat_kernel, batch=B, d_model=D),
            out_shape=jax.ShapeDtypeStruct((T, L), x.dtype),
            grid_spec=pltpu.PrefetchScalarGridSpec(
                num_scalar_prefetch=0,
                grid=(pl.cdiv(T, tile_t),),
                in_specs=[pl.BlockSpec((tile_t, L), lambda t: (t, 0)),
                          pl.BlockSpec((tile_t, D), lambda t: (t, 0))],
                out_specs=pl.BlockSpec((tile_t, L), lambda t: (t, 0)),
            ),
            compiler_params=compiler_params,
            input_output_aliases=io_alias,
        )(x2, pe_arr)
        return out2.reshape(T, B, D)

    # B >= 8: contiguous (tile_t, B, D) blocks, pe broadcast over the batch sublanes.
    Bp, Dp = _round_up(B, 8), _round_up(D, 128)
    per_row = 2 * 2 * Bp * Dp * itemsize + 2 * 8 * Dp * 4
    if tile_t is None:
        tile_t = _choose_tile_t(T, per_row, budget, cores)
    tile_t = min(tile_t, T)
    pe3 = pe.reshape(max_len, 1, D)                    # free unit-dim reshape
    return pl.pallas_call(
        _pe_add_kernel,
        out_shape=jax.ShapeDtypeStruct((T, B, D), x.dtype),
        grid_spec=pltpu.PrefetchScalarGridSpec(
            num_scalar_prefetch=0,
            grid=(pl.cdiv(T, tile_t),),
            in_specs=[pl.BlockSpec((tile_t, B, D), lambda t: (t, 0, 0)),
                      pl.BlockSpec((tile_t, 1, D), lambda t: (t, 0, 0))],
            out_specs=pl.BlockSpec((tile_t, B, D), lambda t: (t, 0, 0)),
        ),
        compiler_params=compiler_params,
        input_output_aliases=io_alias,
    )(x, pe3)


if __name__ == "__main__":
    key = jax.random.PRNGKey(0)
    max_len = 5000

    def reference(x, pe_buf):
        T = x.shape[0]
        return (x.astype(jnp.float32) + pe_buf[:T][:, None, :]).astype(x.dtype)

    # Case 1: tiny module-consistent shape (seq=8, batch=2, d_model=32), f32, single grid step.
    d_model, seq_len, batch = 32, 8, 2
    pe = make_sinusoidal_pe(d_model, max_len)
    x = jax.random.normal(key, (seq_len, batch, d_model), dtype=jnp.float32)
    out = jax.block_until_ready(positional_encoding_forward(x, pe))
    assert out.shape == (seq_len, batch, d_model) and out.dtype == x.dtype
    assert jnp.allclose(out, reference(x, pe), atol=1e-6), "mismatch (tiny f32)"

    # Case 2: lane-dense small-batch shape, bf16 activations, multi-step grid (folded-batch path).
    d_model, seq_len, batch = 128, 256, 2
    pe2 = make_sinusoidal_pe(d_model, max_len)
    k1, k2 = jax.random.split(key)
    x2 = jax.random.normal(k1, (seq_len, batch, d_model), dtype=jnp.float32).astype(jnp.bfloat16)
    out2 = jax.block_until_ready(positional_encoding_forward(x2, pe2))
    assert out2.dtype == jnp.bfloat16
    assert jnp.allclose(out2.astype(jnp.float32),
                        reference(x2, pe2).astype(jnp.float32),
                        atol=2e-2), "mismatch (bf16, f32-accumulate)"

    # Case 3: batch >= 8 exercises the contiguous (tile_t, B, D) layout.
    d_model, seq_len, batch = 128, 64, 8
    x3 = jax.random.normal(k2, (seq_len, batch, d_model), dtype=jnp.float32)
    out3 = jax.block_until_ready(positional_encoding_forward(x3, pe2))
    assert jnp.allclose(out3, reference(x3, pe2), atol=1e-6), "mismatch (B>=8 f32)"

    print("KERNEL_OK")
</pallas_src>

<mosaic_0001>
module attributes {stable_mosaic.version = 11 : i64} {
  func.func @_pe_add_flat_kernel(%arg0: i32, %arg1: memref<8x64xf32, #tpu.memory_space<vmem>>, %arg2: memref<8x32xf32, #tpu.memory_space<vmem>>, %arg3: memref<8x64xf32, #tpu.memory_space<vmem>>) attributes {dimension_semantics = [#tpu.dimension_semantics<parallel>], iteration_bounds = array<i64: 1>, scalar_prefetch = 0 : i64, scratch_operands = 0 : i64, tpu.core_type = #tpu.core_type<tc>, window_params = [{transform_indices = @transform_0, window_bounds = array<i64: 8, 64>}, {transform_indices = @transform_1, window_bounds = array<i64: 8, 32>}, {transform_indices = @transform_2, window_bounds = array<i64: 8, 64>}]} {
    %c0 = arith.constant 0 : index
    %c0_0 = arith.constant 0 : index
    %0 = vector.load %arg2[%c0, %c0_0] : memref<8x32xf32, #tpu.memory_space<vmem>>, vector<8x32xf32>
    %c0_1 = arith.constant 0 : index
    %c0_2 = arith.constant 0 : index
    %1 = vector.load %arg1[%c0_1, %c0_2] : memref<8x64xf32, #tpu.memory_space<vmem>>, vector<8x32xf32>
    %2 = arith.addf %1, %0 : vector<8x32xf32>
    %c0_3 = arith.constant 0 : index
    %c0_4 = arith.constant 0 : index
    %3 = vector.load %arg3[%c0_3, %c0_4] : memref<8x64xf32, #tpu.memory_space<vmem>>, vector<8x32xf32>
    tpu.vector_store %arg3[%c0_3, %c0_4], %2 {strides = array<i32>} : memref<8x64xf32, #tpu.memory_space<vmem>>, vector<8x32xf32>,
    %c0_5 = arith.constant 0 : index
    %c32 = arith.constant 32 : index
    %4 = vector.load %arg1[%c0_5, %c32] : memref<8x64xf32, #tpu.memory_space<vmem>>, vector<8x32xf32>
    %5 = arith.addf %4, %0 : vector<8x32xf32>
    %c0_6 = arith.constant 0 : index
    %c32_7 = arith.constant 32 : index
    %6 = vector.load %arg3[%c0_6, %c32_7] : memref<8x64xf32, #tpu.memory_space<vmem>>, vector<8x32xf32>
    tpu.vector_store %arg3[%c0_6, %c32_7], %5 {strides = array<i32>} : memref<8x64xf32, #tpu.memory_space<vmem>>, vector<8x32xf32>,
    return
  }
  func.func @transform_0(%arg0: i32) -> (i32, i32) {
    %c0_i32 = arith.constant 0 : i32
    %c0_i32_0 = arith.constant 0 : i32
    return %arg0, %c0_i32 : i32, i32
  }
  func.func @transform_1(%arg0: i32) -> (i32, i32) {
    %c0_i32 = arith.constant 0 : i32
    %c0_i32_0 = arith.constant 0 : i32
    return %arg0, %c0_i32 : i32, i32
  }
  func.func @transform_2(%arg0: i32) -> (i32, i32) {
    %c0_i32 = arith.constant 0 : i32
    %c0_i32_0 = arith.constant 0 : i32
    return %arg0, %c0_i32 : i32, i32
  }
}

</mosaic_0001>

<llo_original>
// kernel: tpu_custom_call.1
$region0: #{tpu_custom_call.1}
  #allocation0 [shape = 'u32[]', space=smem, size = 0x4, offset = 0x4, fixed_abs, tag = 'smem constant byte address 0x4 - core index']
  #allocation1 [shape = 'u32[144,128]{1,0:T(1,128)}', space=vmem, size = 0x12000, scoped, tag = 'internal scratch']
  %s0 = inlined_call_operand.vmem [shape: f32[8,64], index: 0, kind: input, shape index: {}]
  %s1 = inlined_call_operand.vmem [shape: f32[5000,32], index: 1, kind: input, shape index: {}]
  %s2 = inlined_call_operand.hbm [shape: f32[8,64], index: 2, kind: output, shape index: {}]
  %s3 = sld [smem:[#allocation0]]
  $region18: #{tpu_custom_call.1} parent=0
    _
  %s5 = ssub.s32 1, %s3
  %s6 = scalar_select 0, %s5, %s3
  $region1: #{tpu_custom_call.1} parent=0
    #allocation2 [shape = 'u8[4096]{0}', space=vmem, size = 0x1000, scoped, tag = 'output window, operand 0, single buffered']
    #allocation3 [shape = 's32[1]{0}', space=sflag, size = 0x4, scoped, tag = 'scoped memory for tpu_custom_call.1']
    %7 = vsyncpa [#allocation3], 0
    // Predicated region
    $region2: #{tpu_custom_call.1} parent=1 // pred_check
      _
    $region3: #{tpu_custom_call.1} parent=1 // pred_check_branch
      %9 = sbr.rel (0) target = $region5
    $region4: #{tpu_custom_call.1} parent=1 // pred_region
      _
    $region5: #{tpu_custom_call.1} parent=1 // pred_fallthru
      _
    // Predicated region
    $region6: #{tpu_custom_call.1} parent=1 // pred_check
      _
    $region7: #{tpu_custom_call.1} parent=1 // pred_check_branch
      %11 = sbr.rel (0) target = $region9
    $region8: #{tpu_custom_call.1} parent=1 // pred_region
      _
    $region9: #{tpu_custom_call.1} parent=1 // pred_fallthru
      _
    %v12 = vld [vmem:[%s1] sm:$0xff]
    %v13 = vld [vmem:[%s0] sm:$0xff]
    %v14 = vadd.f32 %v13, %v12
    %vm15 = vcmask 261120
    %16 = vst.msk [vmem:[#allocation2] sm:$0xff] %vm15, %v14
    %v17 = vld [vmem:[%s0] sm:$0xff]
    %19 = vrot.lane.b32.xlu0 %v12, 32
    %v20 = vpop.permute.xlu0 %19
    %v22 = vadd.f32 %v17, %v20
    %vm23 = vcmask 523520
    %24 = vst.msk [vmem:[#allocation2] sm:$0xff] %vm23, %v22
    // Predicated region
    $region10: #{tpu_custom_call.1} parent=1 // pred_check
      _
    $region11: #{tpu_custom_call.1} parent=1 // pred_check_branch
      %26 = sbr.rel (0) target = $region13
    $region12: #{tpu_custom_call.1} parent=1 // pred_region
      %s28 = ssub.s32 128, 128
      %29 = vsyncadd [#allocation3], %s28
      %s31 = sshll.u32 [#allocation2], 4
      %s32 = int_to_ptr.vmem [resolvable:$true] %s31
      %34 = dma.vmem_to_hbm [thread:$0]  %s32, 128, %s2, [#allocation3]
    $region13: #{tpu_custom_call.1} parent=1 // pred_fallthru
      _
    // Predicated region
    $region14: #{tpu_custom_call.1} parent=1 // pred_check
      _
    $region15: #{tpu_custom_call.1} parent=1 // pred_check_branch
      %36 = sbr.rel (0) target = $region17
    $region16: #{tpu_custom_call.1} parent=1 // pred_region
      %37 = dma.done [#allocation3], 128
    $region17: #{tpu_custom_call.1} parent=1 // pred_fallthru
      _
    %38 = vsyncpa [#allocation3], 1

</llo_original>
